<compile_context>
chip_gen: v7x
topology: tpu7x:2x2x1
jax: 0.10.0
libtpu: 0.0.40
codegen_flags: <defaults>
</compile_context>

<pallas_src>
import math
import numpy as np
import jax
import jax.numpy as jnp
from jax import lax
from jax.experimental import pallas as pl
from jax.experimental.pallas import tpu as pltpu


VMEM_LIMIT = 48 * 1024 * 1024   # explicit scoped-VMEM limit (under v7x's 64 MiB physical VMEM)


# -----------------------------------------------------------------------------
# Config (MambaConfig equivalent, small shapes; d_inner is a full 128-lane tile)
# -----------------------------------------------------------------------------
class Config:
    d_model = 64           # torch hardcodes 512; generalized (see layout note above)
    d_state = 8
    expand_factor = 2
    d_conv = 4
    dt_min = 0.001
    dt_max = 0.1
    dt_scale = 1.0
    dt_init_floor = 1e-4

    def __init__(self):
        self.d_inner = self.expand_factor * self.d_model      # 128 -> lane-dense
        self.dt_rank = math.ceil(self.d_model / 16)
        self.att_dim = self.d_model // 16                     # MutiHeadSelfAttention: attention_dim // 16
        self.d_k = self.att_dim                               # h = 1 head


# -----------------------------------------------------------------------------
# Kernel 1: conv2d(3x3) + BatchNorm2d(eval) + ReLU + residual + in_proj, row-tiled
# -----------------------------------------------------------------------------
def build_conv_patches(x_seq, H, W, dilation=1):
    """im2col in XLA (feedback: keep the masked-sublane copies out of the kernel)."""
    B, L, C = x_seq.shape
    pad = dilation
    x_img = x_seq.reshape(B, H, W, C)
    xp = jnp.pad(x_img, ((0, 0), (pad, pad), (pad, pad), (0, 0)))
    cols = [xp[:, kh * dilation:kh * dilation + H, kw * dilation:kw * dilation + W, :]
            for kh in range(3) for kw in range(3)]
    return jnp.concatenate(cols, axis=-1).reshape(B * L, 9 * C)


def conv_bn_relu_res_inproj(patches, w2d_bf16, bias, resid, in_w_bf16, bm=256):
    """(M,9C)@(9C,C) conv matmul + bias + BN(eval) + ReLU + residual, fused with in_proj."""
    M, K9 = patches.shape
    C = w2d_bf16.shape[1]
    OUT = in_w_bf16.shape[1]
    bm = min(bm, M)
    # TODO(synk): torch BatchNorm2d in train mode uses batch statistics; eval-mode running
    # stats (mean=0, var=1) are used here -> constant 1/sqrt(1+eps) scale.
    bn_scale = 1.0 / math.sqrt(1.0 + 1e-5)

    def kernel(p_ref, wc_ref, bc_ref, r_ref, wi_ref, o_ref):
        acc = jnp.dot(p_ref[...].astype(jnp.bfloat16), wc_ref[...],
                      preferred_element_type=jnp.float32)
        acc = jnp.maximum((acc + bc_ref[...]) * bn_scale, 0.0) + r_ref[...]
        o_ref[...] = jnp.dot(acc.astype(jnp.bfloat16), wi_ref[...],
                             preferred_element_type=jnp.float32)

    return pl.pallas_call(
        kernel,
        grid=(pl.cdiv(M, bm),),
        in_specs=[
            pl.BlockSpec((bm, K9), lambda i: (i, 0)),
            pl.BlockSpec((K9, C), lambda i: (0, 0)),
            pl.BlockSpec((1, C), lambda i: (0, 0)),
            pl.BlockSpec((bm, C), lambda i: (i, 0)),
            pl.BlockSpec((C, OUT), lambda i: (0, 0)),
        ],
        out_specs=pl.BlockSpec((bm, OUT), lambda i: (i, 0)),
        out_shape=jax.ShapeDtypeStruct((M, OUT), jnp.float32),
        compiler_params=pltpu.CompilerParams(
            dimension_semantics=("parallel",), vmem_limit_bytes=VMEM_LIMIT),
    )(patches, w2d_bf16, bias.reshape(1, C), resid, in_w_bf16)


# -----------------------------------------------------------------------------
# Kernel 2: causal depthwise conv1d + SiLU, both branches, grid=(2, B)
# -----------------------------------------------------------------------------
def dwconv1d_silu_both(xz3, w_stack, b_stack, L, ED):
    """xz3: (B, L, 2*ED); the x half is selected by the BlockSpec (no host split).
    Causal taps via pltpu.roll (XLU) + iota mask. Output (2, B, L, ED)."""
    B = xz3.shape[0]
    K = w_stack.shape[1]

    def kernel(xz_ref, w_ref, b_ref, o_ref):
        x = xz_ref[0]                                    # (L, ED) = x half of xz
        wt = w_ref[0]                                    # (K, ED)
        acc = x * wt[K - 1:K, :]
        row = lax.broadcasted_iota(jnp.int32, (L, ED), 0)
        for d in range(1, K):
            xs = pltpu.roll(x, shift=d, axis=0)          # xs[t] = x[t-d]  (wrap)
            xs = jnp.where(row >= d, xs, 0.0)            # zero the wrapped rows -> causal
            acc = acc + xs * wt[K - 1 - d:K - d, :]
        acc = acc + b_ref[0]
        o_ref[0, 0] = acc * pl.reciprocal(1.0 + jnp.exp(-acc), approx=True)   # SiLU

    return pl.pallas_call(
        kernel,
        grid=(2, B),
        in_specs=[
            pl.BlockSpec((1, L, ED), lambda s, b: (b, 0, 0)),     # x half (block 0 of 2*ED)
            pl.BlockSpec((1, K, ED), lambda s, b: (s, 0, 0)),
            pl.BlockSpec((1, 1, ED), lambda s, b: (s, 0, 0)),
        ],
        out_specs=pl.BlockSpec((1, 1, L, ED), lambda s, b: (s, b, 0, 0)),
        out_shape=jax.ShapeDtypeStruct((2, B, L, ED), jnp.float32),
        compiler_params=pltpu.CompilerParams(
            dimension_semantics=("parallel", "parallel"), vmem_limit_bytes=VMEM_LIMIT),
    )(xz3, w_stack, b_stack)


# -----------------------------------------------------------------------------
# Kernel 3: fused SSM branch(es): x_proj -> dt_proj -> softplus -> selective scan
#           -> self-attention on hs -> fc_o -> C-contraction + D*x.  grid=(S, B)
# -----------------------------------------------------------------------------
def ssm_branches_fused(xs, fp, cfg):
    """xs: (S, B, Lp, ED); fp holds per-branch folded weights stacked on a leading S axis."""
    S, B, Lp, ED = xs.shape
    N = cfg.d_state
    R = cfg.dt_rank
    dk = cfg.d_k
    R2N = R + 2 * N
    scale = 1.0 / math.sqrt(dk)

    def kernel(x_ref, a_ref, d_ref, xw_ref, dtw_ref, dtb_ref,
               wqkv_ref, bqkv_ref, wo_ref, bo_ref, o_ref,
               dA_scr, dBx_scr, hs_scr):
        xb = x_ref[0, 0]                                                   # (Lp, ED) f32
        xbf = xb.astype(jnp.bfloat16)

        # x_proj -> (delta_lowrank | B | C)
        dbc = jnp.dot(xbf, xw_ref[0], preferred_element_type=jnp.float32)  # (Lp, R+2N)
        Bm = dbc[:, R:R + N]                                               # (Lp, N)
        Cm = dbc[:, R + N:R2N]                                             # (Lp, N)

        # dt_proj + stable softplus
        delta = jnp.dot(dbc[:, :R].astype(jnp.bfloat16), dtw_ref[0],
                        preferred_element_type=jnp.float32) + dtb_ref[0]   # (Lp, ED)
        dsp = jnp.log(1.0 + jnp.exp(-jnp.abs(delta))) + jnp.maximum(delta, 0.0)
        dspx = dsp * xb

        # hoisted dA / dBx: dense broadcast fills (no per-n masked sublane stores)
        dA_scr[...] = jnp.exp(dsp[:, None, :] * a_ref[0][None, :, :])      # (Lp, N, ED)
        dBx_scr[...] = dspx[:, None, :] * Bm[:, :, None]                   # (Lp, N, ED)

        # Recurrence: h_t = dA_t * h_{t-1} + dBx_t  (unrolled; state = one (N, ED) slab)
        def step(t, h):
            h = dA_scr[t] * h + dBx_scr[t]
            hs_scr[t] = h
            return h
        lax.fori_loop(0, Lp, step, jnp.zeros((N, ED), jnp.float32), unroll=True)

        # MutiHeadSelfAttention on hs: one flattened qkv matmul (folded dec@{q,k,v} weight)
        hs2 = hs_scr[...].reshape(Lp, N * ED).astype(jnp.bfloat16)
        qkv = jnp.dot(hs2, wqkv_ref[0], preferred_element_type=jnp.float32) + bqkv_ref[0]
        q = qkv[:, :dk].astype(jnp.bfloat16)
        k = qkv[:, dk:2 * dk].astype(jnp.bfloat16)
        v = qkv[:, 2 * dk:].astype(jnp.bfloat16)
        s = lax.dot_general(q, k, (((1,), (1,)), ((), ())),
                            preferred_element_type=jnp.float32) * scale    # (Lp, Lp)
        m = jnp.max(s, axis=-1, keepdims=True)
        e = jnp.exp(s - m)
        p = e * pl.reciprocal(jnp.sum(e, axis=-1, keepdims=True), approx=True)
        att = jnp.dot(p.astype(jnp.bfloat16), v, preferred_element_type=jnp.float32)  # (Lp, dk)

        # fc_o back to (n, e)-flattened space, fused with y = sum_n hs_att_n * C_n + D * x
        hs_att = jnp.dot(att.astype(jnp.bfloat16), wo_ref[0],
                         preferred_element_type=jnp.float32) + bo_ref[0]   # (Lp, N*ED)
        y = xb * d_ref[0]
        for n in range(N):                                                 # lane-aligned slices
            y = y + hs_att[:, n * ED:(n + 1) * ED] * Cm[:, n:n + 1]
        o_ref[0, 0] = y                                                    # lane-dense (Lp, ED)

    return pl.pallas_call(
        kernel,
        grid=(S, B),
        in_specs=[
            pl.BlockSpec((1, 1, Lp, ED), lambda s, b: (s, b, 0, 0)),
            pl.BlockSpec((1, N, ED), lambda s, b: (s, 0, 0)),
            pl.BlockSpec((1, 1, ED), lambda s, b: (s, 0, 0)),
            pl.BlockSpec((1, ED, R2N), lambda s, b: (s, 0, 0)),
            pl.BlockSpec((1, R, ED), lambda s, b: (s, 0, 0)),
            pl.BlockSpec((1, 1, ED), lambda s, b: (s, 0, 0)),
            pl.BlockSpec((1, N * ED, 3 * dk), lambda s, b: (s, 0, 0)),
            pl.BlockSpec((1, 1, 3 * dk), lambda s, b: (s, 0, 0)),
            pl.BlockSpec((1, dk, N * ED), lambda s, b: (s, 0, 0)),
            pl.BlockSpec((1, 1, N * ED), lambda s, b: (s, 0, 0)),
        ],
        out_specs=pl.BlockSpec((1, 1, Lp, ED), lambda s, b: (s, b, 0, 0)),
        out_shape=jax.ShapeDtypeStruct((S, B, Lp, ED), jnp.float32),
        scratch_shapes=[pltpu.VMEM((Lp, N, ED), jnp.float32),   # dA
                        pltpu.VMEM((Lp, N, ED), jnp.float32),   # dBx
                        pltpu.VMEM((Lp, N, ED), jnp.float32)],  # hs (never leaves VMEM)
        compiler_params=pltpu.CompilerParams(
            dimension_semantics=("parallel", "parallel"), vmem_limit_bytes=VMEM_LIMIT),
    )(xs, fp['A_T'], fp['D'], fp['xproj_w'], fp['dtproj_w'], fp['dtproj_b'],
      fp['w_qkv'], fp['b_qkv'], fp['w_o'], fp['b_o'])


# -----------------------------------------------------------------------------
# Kernel 4: output gating + out_proj, row-tiled: out = ((y + y_b) * silu(z)) @ W_out
# -----------------------------------------------------------------------------
def gate_and_out_proj(y2, yb2, xz2, w_out_bf16, ED, bm=256):
    M = y2.shape[0]
    Dm = w_out_bf16.shape[1]
    bm = min(bm, M)

    def kernel(y_ref, yb_ref, z_ref, w_ref, o_ref):
        z = z_ref[...]
        silu_z = z * pl.reciprocal(1.0 + jnp.exp(-z), approx=True)
        g = (y_ref[...] + yb_ref[...]) * silu_z
        o_ref[...] = jnp.dot(g.astype(jnp.bfloat16), w_ref[...],
                             preferred_element_type=jnp.float32)

    return pl.pallas_call(
        kernel,
        grid=(pl.cdiv(M, bm),),
        in_specs=[
            pl.BlockSpec((bm, ED), lambda i: (i, 0)),
            pl.BlockSpec((bm, ED), lambda i: (i, 0)),
            pl.BlockSpec((bm, ED), lambda i: (i, 1)),   # z = second ED-block of xz (no host split)
            pl.BlockSpec((ED, Dm), lambda i: (0, 0)),
        ],
        out_specs=pl.BlockSpec((bm, Dm), lambda i: (i, 0)),
        out_shape=jax.ShapeDtypeStruct((M, Dm), jnp.float32),
        compiler_params=pltpu.CompilerParams(
            dimension_semantics=("parallel",), vmem_limit_bytes=VMEM_LIMIT),
    )(y2, yb2, xz2, w_out_bf16)


# -----------------------------------------------------------------------------
# Host-side parameter folding (done once; torch semantics, kernel-friendly layout, bf16 MXU weights)
# -----------------------------------------------------------------------------
def fold_branch_params(p, sfx, cfg):
    ED, N = cfg.d_inner, cfg.d_state
    att_dim, dk = cfg.att_dim, cfg.d_k
    # torch flattens hs as (..., ED, N) -> (e, n) order; the kernel flattens (N, ED) -> (n, e):
    # permute the attention weights' hs rows/cols accordingly.
    dec = p['att_dec_w' + sfx].reshape(ED, N, att_dim).transpose(1, 0, 2).reshape(N * ED, att_dim)
    dec_b = p['att_dec_b' + sfx]

    def fold(wq, bq):
        return dec @ wq, dec_b @ wq + bq

    Wq, bq = fold(p['att_q_w' + sfx], p['att_q_b' + sfx])
    Wk, bk = fold(p['att_k_w' + sfx], p['att_k_b' + sfx])
    Wv, bv = fold(p['att_v_w' + sfx], p['att_v_b' + sfx])
    w_qkv = jnp.concatenate([Wq, Wk, Wv], axis=1)                         # (N*ED, 3dk)
    b_qkv = jnp.concatenate([bq, bk, bv], axis=0)                         # (3dk,)
    w_o = p['att_o_w' + sfx].reshape(dk, ED, N).transpose(0, 2, 1).reshape(dk, N * ED)
    b_o = p['att_o_b' + sfx].reshape(ED, N).T.reshape(N * ED)
    A_T = -jnp.exp(p['A_log' + sfx]).T                                    # (N, ED), ED on lanes
    return dict(
        A_T=A_T.astype(jnp.float32),
        D=p['D' + sfx].reshape(1, ED).astype(jnp.float32),
        xproj_w=p['x_proj_w' + sfx].astype(jnp.bfloat16),
        dtproj_w=p['dt_proj_w' + sfx].astype(jnp.bfloat16),
        dtproj_b=p['dt_proj_bias' + sfx].reshape(1, ED).astype(jnp.float32),
        w_qkv=w_qkv.astype(jnp.bfloat16),
        b_qkv=b_qkv.reshape(1, 3 * dk).astype(jnp.float32),
        w_o=w_o.astype(jnp.bfloat16),
        b_o=b_o.reshape(1, N * ED).astype(jnp.float32))


def stack_branch_params(p, cfg):
    f = fold_branch_params(p, '', cfg)
    b = fold_branch_params(p, '_b', cfg)
    return {key: jnp.stack([f[key], b[key]], axis=0) for key in f}


# -----------------------------------------------------------------------------
# TokenReplacement glue (host-side deterministic RNG stands in for torch.randperm/randn)
# -----------------------------------------------------------------------------
def mutate_feature_dif(x, rng, mutation_rate=0.1):
    B, L, D = x.shape
    n_mut = int(mutation_rate * L)
    if n_mut == 0:
        return x
    for i in range(B):
        idx = np.asarray(rng.permutation(L)[:n_mut])
        rnd = jnp.asarray(rng.standard_normal((n_mut, D)), dtype=x.dtype)
        x = x.at[i, idx].set(rnd)
    return x


def create_individual(x, num_individual=4):
    B, L, D = x.shape
    if L % num_individual != 0:
        n_sub = L // num_individual + 1
        pad_len = n_sub * num_individual - L
        x = jnp.concatenate([x, jnp.zeros((B, pad_len, D), x.dtype)], axis=1)
    else:
        pad_len = None
    return x.reshape(B, num_individual, -1, D), pad_len


def crossover(ind, rng, k=2):
    B, n_grp, n_sub, D = ind.shape
    crossed = []
    for i in range(B):
        g = rng.permutation(n_grp)[:2]
        g0, g1 = int(g[0]), int(g[1])
        a = ind[i, g0, -k:]
        b = ind[i, g1, -k:]
        ind = ind.at[i, g0, -k:].set(b)
        ind = ind.at[i, g1, -k:].set(a)
        crossed.append((g0, g1))
    return ind.reshape(B, n_grp * n_sub, D), crossed


def reverse_crossover(y, crossed, num_individual=4, k=2):
    B, L, D = y.shape
    ind = y.reshape(B, num_individual, -1, D)
    for i in range(B):
        g0, g1 = crossed[i]
        a = ind[i, g0, -k:]
        b = ind[i, g1, -k:]
        ind = ind.at[i, g0, -k:].set(b)
        ind = ind.at[i, g1, -k:].set(a)
    return ind.reshape(B, L, D)


def remove_padding(y, pad_len):
    return y if pad_len is None else y[:, :-pad_len, :]


# -----------------------------------------------------------------------------
# Module-level composition
# -----------------------------------------------------------------------------
def mamba_block_forward(p, x, cfg, rng, dilation=1):
    B, L, D = x.shape
    H = W = int(round(math.sqrt(L)))
    assert H * W == L, "L must be a perfect square (torch hardcodes 7*7=49)"
    ED = cfg.d_inner

    fp = stack_branch_params(p, cfg)

    # conv2d(3x3) + BatchNorm2d(eval) + ReLU + residual, fused with in_proj (bias=False)
    patches = build_conv_patches(x, H, W, dilation)
    xz2 = conv_bn_relu_res_inproj(
        patches, p['conv2d_w'].reshape(9 * D, D).astype(jnp.bfloat16), p['conv2d_b'],
        x.reshape(B * L, D), p['in_proj_w'].astype(jnp.bfloat16))           # (B*L, 2*ED)
    xz3 = xz2.reshape(B, L, 2 * ED)

    # causal depthwise conv1d + SiLU, both branches in one call (x half selected by BlockSpec)
    w_stack = jnp.stack([p['conv1d_w'], p['conv1d_w_b']], axis=0)
    b_stack = jnp.stack([p['conv1d_bias'].reshape(1, ED), p['conv1d_bias_b'].reshape(1, ED)], axis=0)
    xc_both = dwconv1d_silu_both(xz3, w_stack, b_stack, L, ED)              # (2, B, L, ED)

    # TokenReplacement: torch's random() < 1 branch is always taken; host RNG is deterministic.
    xc = mutate_feature_dif(xc_both[0], rng)
    ind, pad_len = create_individual(xc)
    xc, crossed = crossover(ind, rng)                                       # (B, Lp, ED)
    # TODO(synk): torch applies the backward-branch mutation with prob 0.8; applied deterministically.
    xb = mutate_feature_dif(xc_both[1], rng)                                # (B, L, ED)

    if pad_len is None:
        xs = jnp.stack([xc, xb], axis=0)                                    # (2, B, L, ED)
        ys = ssm_branches_fused(xs, fp, cfg)
        y, y_b = ys[0], ys[1]
    else:
        # branch lengths differ (forward padded by create_individual); run branches separately
        y = ssm_branches_fused(xc[None], {k: v[0:1] for k, v in fp.items()}, cfg)[0]
        y_b = ssm_branches_fused(xb[None], {k: v[1:2] for k, v in fp.items()}, cfg)[0]

    y = reverse_crossover(y, crossed)
    y = remove_padding(y, pad_len)                                          # (B, L, ED)

    # output gating + out_proj: ((y + y_b) * silu(z)) @ W_out ; z taken from xz via BlockSpec
    out = gate_and_out_proj(y.reshape(B * L, ED), y_b.reshape(B * L, ED),
                            xz2, p['out_proj_w'].astype(jnp.bfloat16), ED)
    return out.reshape(B, L, D)


# -----------------------------------------------------------------------------
# Deterministic parameter initialization (shapes follow the torch __init__)
# -----------------------------------------------------------------------------
def init_params(key, cfg):
    D, ED = cfg.d_model, cfg.d_inner
    N, R, K = cfg.d_state, cfg.dt_rank, cfg.d_conv
    att_dim, dk = cfg.att_dim, cfg.d_k
    kit = iter(jax.random.split(key, 40))

    def lin_w(fin, fout):
        return jax.random.normal(next(kit), (fin, fout), jnp.float32) / math.sqrt(fin)

    p = {}
    p['conv2d_w'] = jax.random.normal(next(kit), (3, 3, D, D), jnp.float32) / math.sqrt(9 * D)
    p['conv2d_b'] = jnp.zeros((D,), jnp.float32)
    p['in_proj_w'] = lin_w(D, 2 * ED)
    p['out_proj_w'] = lin_w(ED, D)

    for sfx in ('', '_b'):
        p['conv1d_w' + sfx] = jax.random.normal(next(kit), (K, ED), jnp.float32) / math.sqrt(K)
        p['conv1d_bias' + sfx] = jnp.zeros((ED,), jnp.float32)
        p['x_proj_w' + sfx] = lin_w(ED, R + 2 * N)
        dt_std = (R ** -0.5) * cfg.dt_scale
        p['dt_proj_w' + sfx] = jax.random.uniform(next(kit), (R, ED), jnp.float32,
                                                  minval=-dt_std, maxval=dt_std)
        u = jax.random.uniform(next(kit), (ED,), jnp.float32)
        dt = jnp.exp(u * (math.log(cfg.dt_max) - math.log(cfg.dt_min)) + math.log(cfg.dt_min))
        dt = jnp.maximum(dt, cfg.dt_init_floor)
        p['dt_proj_bias' + sfx] = dt + jnp.log(-jnp.expm1(-dt))
        A = jnp.tile(jnp.arange(1, N + 1, dtype=jnp.float32)[None, :], (ED, 1))
        p['A_log' + sfx] = jnp.log(A)
        p['D' + sfx] = jnp.ones((ED,), jnp.float32)
        # MutiHeadSelfAttention (h=1); weights stored (in, out); hs flattened in torch (e, n) order
        p['att_dec_w' + sfx] = lin_w(ED * N, att_dim)
        p['att_dec_b' + sfx] = jnp.zeros((att_dim,), jnp.float32)
        p['att_q_w' + sfx] = lin_w(att_dim, dk)
        p['att_q_b' + sfx] = jnp.zeros((dk,), jnp.float32)
        p['att_k_w' + sfx] = lin_w(att_dim, dk)
        p['att_k_b' + sfx] = jnp.zeros((dk,), jnp.float32)
        p['att_v_w' + sfx] = lin_w(att_dim, dk)
        p['att_v_b' + sfx] = jnp.zeros((dk,), jnp.float32)
        p['att_o_w' + sfx] = lin_w(dk, ED * N)
        p['att_o_b' + sfx] = jnp.zeros((ED * N,), jnp.float32)
    return p


if __name__ == "__main__":
    cfg = Config()
    B, L = 2, 16                       # L must be a perfect square (torch hardcodes 7*7=49)
    key = jax.random.PRNGKey(0)
    k_x, k_p = jax.random.split(key)
    x = jax.random.normal(k_x, (B, L, cfg.d_model), jnp.float32)
    params = init_params(k_p, cfg)
    rng = np.random.default_rng(0)     # deterministic stand-in for torch random/randperm/randn

    out = mamba_block_forward(params, x, cfg, rng)
    out = jax.block_until_ready(out)
    assert out.shape == (B, L, cfg.d_model), out.shape
    assert bool(jnp.all(jnp.isfinite(out)))
    print("KERNEL_OK")
</pallas_src>

<mosaic_0001>
module attributes {stable_mosaic.version = 11 : i64} {
  func.func @kernel(%arg0: i32, %arg1: memref<32x576xf32, #tpu.memory_space<vmem>>, %arg2: memref<576x64xbf16, #tpu.memory_space<vmem>>, %arg3: memref<1x64xf32, #tpu.memory_space<vmem>>, %arg4: memref<32x64xf32, #tpu.memory_space<vmem>>, %arg5: memref<64x256xbf16, #tpu.memory_space<vmem>>, %arg6: memref<32x256xf32, #tpu.memory_space<vmem>>) attributes {dimension_semantics = [#tpu.dimension_semantics<parallel>], iteration_bounds = array<i64: 1>, scalar_prefetch = 0 : i64, scratch_operands = 0 : i64, tpu.core_type = #tpu.core_type<tc>, window_params = [{transform_indices = @transform_0, window_bounds = array<i64: 32, 576>}, {pipeline_mode = #tpu.pipeline_mode<synchronous>, transform_indices = @transform_1, window_bounds = array<i64: 576, 64>}, {pipeline_mode = #tpu.pipeline_mode<synchronous>, transform_indices = @transform_2, window_bounds = array<i64: 1, 64>}, {transform_indices = @transform_3, window_bounds = array<i64: 32, 64>}, {pipeline_mode = #tpu.pipeline_mode<synchronous>, transform_indices = @transform_4, window_bounds = array<i64: 64, 256>}, {transform_indices = @transform_5, window_bounds = array<i64: 32, 256>}]} {
    %c0 = arith.constant 0 : index
    %c0_0 = arith.constant 0 : index
    %0 = vector.load %arg1[%c0, %c0_0] : memref<32x576xf32, #tpu.memory_space<vmem>>, vector<32x576xf32>
    %1 = arith.truncf %0 : vector<32x576xf32> to vector<32x576xbf16>
    %c0_1 = arith.constant 0 : index
    %c0_2 = arith.constant 0 : index
    %2 = vector.load %arg2[%c0_1, %c0_2] : memref<576x64xbf16, #tpu.memory_space<vmem>>, vector<576x64xbf16>
    %cst = arith.constant dense<0.000000e+00> : vector<32x64xf32>
    %3 = tpu.matmul %1, %2, %cst {dimension_numbers = #tpu.dot_dimension_numbers<[1], [0], [0], [1], [0, 0, 1, 1], [], []>} : vector<32x576xbf16>, vector<576x64xbf16>, vector<32x64xf32> -> vector<32x64xf32>
    %c0_3 = arith.constant 0 : index
    %c0_4 = arith.constant 0 : index
    %4 = vector.load %arg3[%c0_3, %c0_4] : memref<1x64xf32, #tpu.memory_space<vmem>>, vector<1x64xf32>
    %5 = vector.broadcast %4 : vector<1x64xf32> to vector<32x64xf32>
    %6 = arith.addf %3, %5 : vector<32x64xf32>
    %cst_5 = arith.constant 0.999994993 : f32
    %7 = vector.broadcast %cst_5 : f32 to vector<32x64xf32>
    %8 = arith.mulf %6, %7 : vector<32x64xf32>
    %cst_6 = arith.constant 0.000000e+00 : f32
    %9 = vector.broadcast %cst_6 : f32 to vector<32x64xf32>
    %10 = arith.maximumf %8, %9 : vector<32x64xf32>
    %c0_7 = arith.constant 0 : index
    %c0_8 = arith.constant 0 : index
    %11 = vector.load %arg4[%c0_7, %c0_8] : memref<32x64xf32, #tpu.memory_space<vmem>>, vector<32x64xf32>
    %12 = arith.addf %10, %11 : vector<32x64xf32>
    %13 = arith.truncf %12 : vector<32x64xf32> to vector<32x64xbf16>
    %c0_9 = arith.constant 0 : index
    %c0_10 = arith.constant 0 : index
    %14 = vector.load %arg5[%c0_9, %c0_10] : memref<64x256xbf16, #tpu.memory_space<vmem>>, vector<64x256xbf16>
    %cst_11 = arith.constant dense<0.000000e+00> : vector<32x256xf32>
    %15 = tpu.matmul %13, %14, %cst_11 {dimension_numbers = #tpu.dot_dimension_numbers<[1], [0], [0], [1], [0, 0, 1, 1], [], []>} : vector<32x64xbf16>, vector<64x256xbf16>, vector<32x256xf32> -> vector<32x256xf32>
    %c0_12 = arith.constant 0 : index
    %c0_13 = arith.constant 0 : index
    %16 = vector.load %arg6[%c0_12, %c0_13] : memref<32x256xf32, #tpu.memory_space<vmem>>, vector<32x256xf32>
    tpu.vector_store %arg6[%c0_12, %c0_13], %15 {strides = array<i32>} : memref<32x256xf32, #tpu.memory_space<vmem>>, vector<32x256xf32>,
    return
  }
  func.func @transform_0(%arg0: i32) -> (i32, i32) {
    %c0_i32 = arith.constant 0 : i32
    %c0_i32_0 = arith.constant 0 : i32
    return %arg0, %c0_i32 : i32, i32
  }
  func.func @transform_1(%arg0: i32) -> (i32, i32) {
    %c0_i32 = arith.constant 0 : i32
    %c0_i32_0 = arith.constant 0 : i32
    %c0_i32_1 = arith.constant 0 : i32
    return %c0_i32, %c0_i32_0 : i32, i32
  }
  func.func @transform_2(%arg0: i32) -> (i32, i32) {
    %c0_i32 = arith.constant 0 : i32
    %c0_i32_0 = arith.constant 0 : i32
    %c0_i32_1 = arith.constant 0 : i32
    return %c0_i32, %c0_i32_0 : i32, i32
  }
  func.func @transform_3(%arg0: i32) -> (i32, i32) {
    %c0_i32 = arith.constant 0 : i32
    %c0_i32_0 = arith.constant 0 : i32
    return %arg0, %c0_i32 : i32, i32
  }
  func.func @transform_4(%arg0: i32) -> (i32, i32) {
    %c0_i32 = arith.constant 0 : i32
    %c0_i32_0 = arith.constant 0 : i32
    %c0_i32_1 = arith.constant 0 : i32
    return %c0_i32, %c0_i32_0 : i32, i32
  }
  func.func @transform_5(%arg0: i32) -> (i32, i32) {
    %c0_i32 = arith.constant 0 : i32
    %c0_i32_0 = arith.constant 0 : i32
    return %arg0, %c0_i32 : i32, i32
  }
}

</mosaic_0001>

<llo_original>
// kernel: tpu_custom_call.1
$region0: #{tpu_custom_call.1}
  #allocation0 [shape = 'u32[]', space=smem, size = 0x4, offset = 0x4, fixed_abs, tag = 'smem constant byte address 0x4 - core index']
  #allocation1 [shape = 'u32[144,128]{1,0:T(1,128)}', space=vmem, size = 0x12000, scoped, tag = 'internal scratch']
  %s0 = inlined_call_operand.vmem [shape: f32[32,576], index: 0, kind: input, shape index: {}]
  %s1 = inlined_call_operand.vmem [shape: bf16[576,64], index: 1, kind: input, shape index: {}]
  %s2 = inlined_call_operand.vmem [shape: f32[1,64], index: 2, kind: input, shape index: {}]
  %s3 = inlined_call_operand.vmem [shape: f32[32,64], index: 3, kind: input, shape index: {}]
  %s4 = inlined_call_operand.vmem [shape: bf16[64,256], index: 4, kind: input, shape index: {}]
  %s5 = inlined_call_operand.hbm [shape: f32[32,256], index: 5, kind: output, shape index: {}]
  %s6 = sld [smem:[#allocation0]]
  $region30: #{tpu_custom_call.1} parent=0
    _
  %s8 = ssub.s32 1, %s6
  %s9 = scalar_select 0, %s8, %s6
  $region1: #{tpu_custom_call.1} parent=0
    #allocation2 [shape = 'u8[32768]{0}', space=vmem, size = 0x8000, scoped, tag = 'output window, operand 0, single buffered']
    #allocation3 [shape = 's32[1]{0}', space=sflag, size = 0x4, scoped, tag = 'scoped memory for tpu_custom_call.1']
    %10 = vsyncpa [#allocation3], 0
    // Predicated region
    $region2: #{tpu_custom_call.1} parent=1 // pred_check
      _
    $region3: #{tpu_custom_call.1} parent=1 // pred_check_branch
      %12 = sbr.rel (0) target = $region5
    $region4: #{tpu_custom_call.1} parent=1 // pred_region
      _
    $region5: #{tpu_custom_call.1} parent=1 // pred_fallthru
      _
    // Predicated region
    $region6: #{tpu_custom_call.1} parent=1 // pred_check
      _
    $region7: #{tpu_custom_call.1} parent=1 // pred_check_branch
      %14 = sbr.rel (0) target = $region9
    $region8: #{tpu_custom_call.1} parent=1 // pred_region
      _
    $region9: #{tpu_custom_call.1} parent=1 // pred_fallthru
      _
    // Predicated region
    $region10: #{tpu_custom_call.1} parent=1 // pred_check
      _
    $region11: #{tpu_custom_call.1} parent=1 // pred_check_branch
      %16 = sbr.rel (0) target = $region13
    $region12: #{tpu_custom_call.1} parent=1 // pred_region
      _
    $region13: #{tpu_custom_call.1} parent=1 // pred_fallthru
      _
    // Predicated region
    $region14: #{tpu_custom_call.1} parent=1 // pred_check
      _
    $region15: #{tpu_custom_call.1} parent=1 // pred_check_branch
      %18 = sbr.rel (0) target = $region17
    $region16: #{tpu_custom_call.1} parent=1 // pred_region
      _
    $region17: #{tpu_custom_call.1} parent=1 // pred_fallthru
      _
    // Predicated region
    $region18: #{tpu_custom_call.1} parent=1 // pred_check
      _
    $region19: #{tpu_custom_call.1} parent=1 // pred_check_branch
      %20 = sbr.rel (0) target = $region21
    $region20: #{tpu_custom_call.1} parent=1 // pred_region
      _
    $region21: #{tpu_custom_call.1} parent=1 // pred_fallthru
      _
    %v22 = vld [vmem:[%s0] sm:$0xff]
    %v23 = vld [vmem:[%s0 + $0x8] sm:$0xff]
    %v24 = vld [vmem:[%s0 + $0x10] sm:$0xff]
    %v25 = vld [vmem:[%s0 + $0x18] sm:$0xff]
    %v26 = vld [vmem:[%s0 + $0x20] sm:$0xff]
    %v27 = vld [vmem:[%s0 + $0x28] sm:$0xff]
    %v28 = vld [vmem:[%s0 + $0x30] sm:$0xff]
    %v29 = vld [vmem:[%s0 + $0x38] sm:$0xff]
    %v30 = vld [vmem:[%s0 + $0x40] sm:$0xff]
    %v31 = vld [vmem:[%s0 + $0x48] sm:$0xff]
    %v32 = vld [vmem:[%s0 + $0x50] sm:$0xff]
    %v33 = vld [vmem:[%s0 + $0x58] sm:$0xff]
    %v34 = vld [vmem:[%s0 + $0x60] sm:$0xff]
    %v35 = vld [vmem:[%s0 + $0x68] sm:$0xff]
    %v36 = vld [vmem:[%s0 + $0x70] sm:$0xff]
    %v37 = vld [vmem:[%s0 + $0x78] sm:$0xff]
    %v38 = vld [vmem:[%s0 + $0x80] sm:$0xff]
    %v39 = vld [vmem:[%s0 + $0x88] sm:$0xff]
    %v40 = vld [vmem:[%s0 + $0x90] sm:$0xff]
    %v41 = vld [vmem:[%s0 + $0x98] sm:$0xff]
    %v42 = vpack.c.bf16 %v27, %v22
    %v43 = vpack.c.bf16 %v28, %v23
    %v44 = vpack.c.bf16 %v29, %v24
    %v45 = vpack.c.bf16 %v30, %v25
    %v46 = vpack.c.bf16 %v31, %v26
    %v47 = vpack.c.bf16 %v37, %v32
    %v48 = vpack.c.bf16 %v38, %v33
    %v49 = vpack.c.bf16 %v39, %v34
    %v50 = vpack.c.bf16 %v40, %v35
    %v51 = vpack.c.bf16 %v41, %v36
    %v52 = vld [vmem:[%s1] sm:$0xf]
    %v53 = vld [vmem:[%s1 + $0x4] sm:$0xf]
    %v54 = vld [vmem:[%s1 + $0x8] sm:$0xf]
    %v55 = vld [vmem:[%s1 + $0xc] sm:$0xf]
    %v56 = vld [vmem:[%s1 + $0x10] sm:$0xf]
    %v57 = vld [vmem:[%s1 + $0x14] sm:$0xf]
    %v58 = vld [vmem:[%s1 + $0x18] sm:$0xf]
    %v59 = vld [vmem:[%s1 + $0x1c] sm:$0xf]
    %v60 = vld [vmem:[%s1 + $0x20] sm:$0xf]
    %v61 = vld [vmem:[%s1 + $0x24] sm:$0xf]
    %v62 = vld [vmem:[%s1 + $0x28] sm:$0xf]
    %v63 = vld [vmem:[%s1 + $0x2c] sm:$0xf]
    %v64 = vld [vmem:[%s1 + $0x30] sm:$0xf]
    %v65 = vld [vmem:[%s1 + $0x34] sm:$0xf]
    %v66 = vld [vmem:[%s1 + $0x38] sm:$0xf]
    %v67 = vld [vmem:[%s1 + $0x3c] sm:$0xf]
    %v68 = vld [vmem:[%s1 + $0x40] sm:$0xf]
    %v69 = vld [vmem:[%s1 + $0x44] sm:$0xf]
    %v70 = vld [vmem:[%s1 + $0x48] sm:$0xf]
    %v71 = vld [vmem:[%s1 + $0x4c] sm:$0xf]
    %v72 = vld [vmem:[%s1 + $0x50] sm:$0xf]
    %v73 = vld [vmem:[%s1 + $0x54] sm:$0xf]
    %v74 = vld [vmem:[%s1 + $0x58] sm:$0xf]
    %v75 = vld [vmem:[%s1 + $0x5c] sm:$0xf]
    %v76 = vld [vmem:[%s1 + $0x60] sm:$0xf]
    %v77 = vld [vmem:[%s1 + $0x64] sm:$0xf]
    %v78 = vld [vmem:[%s1 + $0x68] sm:$0xf]
    %v79 = vld [vmem:[%s1 + $0x6c] sm:$0xf]
    %v80 = vld [vmem:[%s1 + $0x70] sm:$0xf]
    %v81 = vld [vmem:[%s1 + $0x74] sm:$0xf]
    %v82 = vld [vmem:[%s1 + $0x78] sm:$0xf]
    %v83 = vld [vmem:[%s1 + $0x7c] sm:$0xf]
    %v84 = vld [vmem:[%s1 + $0x80] sm:$0xf]
    %v85 = vld [vmem:[%s1 + $0x84] sm:$0xf]
    %v86 = vld [vmem:[%s1 + $0x88] sm:$0xf]
    %v87 = vld [vmem:[%s1 + $0x8c] sm:$0xf]
    %v88 = vld [vmem:[%s1 + $0x90] sm:$0xf]
    %v89 = vld [vmem:[%s1 + $0x94] sm:$0xf]
    %v90 = vld [vmem:[%s1 + $0x98] sm:$0xf]
    %v91 = vld [vmem:[%s1 + $0x9c] sm:$0xf]
    %v92 = vld [vmem:[%s1 + $0xa0] sm:$0xf]
    %v93 = vld [vmem:[%s1 + $0xa4] sm:$0xf]
    %v94 = vld [vmem:[%s1 + $0xa8] sm:$0xf]
    %v95 = vld [vmem:[%s1 + $0xac] sm:$0xf]
    %v96 = vld [vmem:[%s1 + $0xb0] sm:$0xf]
    %v97 = vld [vmem:[%s1 + $0xb4] sm:$0xf]
    %v98 = vld [vmem:[%s1 + $0xb8] sm:$0xf]
    %v99 = vld [vmem:[%s1 + $0xbc] sm:$0xf]
    %v100 = vld [vmem:[%s1 + $0xc0] sm:$0xf]
    %v101 = vld [vmem:[%s1 + $0xc4] sm:$0xf]
    %v102 = vld [vmem:[%s1 + $0xc8] sm:$0xf]
    %v103 = vld [vmem:[%s1 + $0xcc] sm:$0xf]
    %v104 = vld [vmem:[%s1 + $0xd0] sm:$0xf]
    %v105 = vld [vmem:[%s1 + $0xd4] sm:$0xf]
    %v106 = vld [vmem:[%s1 + $0xd8] sm:$0xf]
    %v107 = vld [vmem:[%s1 + $0xdc] sm:$0xf]
    %v108 = vld [vmem:[%s1 + $0xe0] sm:$0xf]
    %v109 = vld [vmem:[%s1 + $0xe4] sm:$0xf]
    %v110 = vld [vmem:[%s1 + $0xe8] sm:$0xf]
    %v111 = vld [vmem:[%s1 + $0xec] sm:$0xf]
    %v112 = vld [vmem:[%s1 + $0xf0] sm:$0xf]
    %v113 = vld [vmem:[%s1 + $0xf4] sm:$0xf]
    %v114 = vld [vmem:[%s1 + $0xf8] sm:$0xf]
    %v115 = vld [vmem:[%s1 + $0xfc] sm:$0xf]
    %v116 = vld [vmem:[%s1 + $0x100] sm:$0xf]
    %v117 = vld [vmem:[%s1 + $0x104] sm:$0xf]
    %v118 = vld [vmem:[%s1 + $0x108] sm:$0xf]
    %v119 = vld [vmem:[%s1 + $0x10c] sm:$0xf]
    %v120 = vld [vmem:[%s1 + $0x110] sm:$0xf]
    %v121 = vld [vmem:[%s1 + $0x114] sm:$0xf]
    %v122 = vld [vmem:[%s1 + $0x118] sm:$0xf]
    %v123 = vld [vmem:[%s1 + $0x11c] sm:$0xf]
    %v124 = vld [vmem:[%s2] sm:$0x1]
    %v126 = vlaneseq
    %v127 = vshrl.u32 %v126, 7
    %v128 = vsub.s32 0, %v127
    %v129 = vrot.slane %v124, %v128
    %v203 = vunpack.c.l.b16 %v52
    %v204 = vunpack.c.l.b16 %v53
    %v205 = vunpack.c.l.b16 %v54
    %v206 = vunpack.c.l.b16 %v55
    %v207 = vunpack.c.l.b16 %v56
    %v208 = vunpack.c.l.b16 %v57
    %v209 = vunpack.c.l.b16 %v58
    %v210 = vunpack.c.l.b16 %v59
    %v211 = vunpack.c.l.b16 %v60
    %v212 = vunpack.c.l.b16 %v61
    %v213 = vunpack.c.l.b16 %v62
    %v214 = vunpack.c.l.b16 %v63
    %v215 = vunpack.c.l.b16 %v64
    %v216 = vunpack.c.l.b16 %v65
    %v217 = vunpack.c.l.b16 %v66
    %v218 = vunpack.c.l.b16 %v67
    %v219 = vunpack.c.l.b16 %v68
    %v220 = vunpack.c.l.b16 %v69
    %v221 = vunpack.c.l.b16 %v70
    %v222 = vunpack.c.l.b16 %v71
    %v223 = vunpack.c.l.b16 %v72
    %v224 = vunpack.c.l.b16 %v73
    %v225 = vunpack.c.l.b16 %v74
    %v226 = vunpack.c.l.b16 %v75
    %v227 = vunpack.c.l.b16 %v76
    %v228 = vunpack.c.l.b16 %v77
    %v229 = vunpack.c.l.b16 %v78
    %v230 = vunpack.c.l.b16 %v79
    %v231 = vunpack.c.l.b16 %v80
    %v232 = vunpack.c.l.b16 %v81
    %v233 = vunpack.c.l.b16 %v82
    %v234 = vunpack.c.l.b16 %v83
    %v235 = vunpack.c.l.b16 %v84
    %v236 = vunpack.c.l.b16 %v85
    %v237 = vunpack.c.l.b16 %v86
    %v238 = vunpack.c.l.b16 %v87
    %v239 = vunpack.c.l.b16 %v88
    %v240 = vunpack.c.l.b16 %v89
    %v241 = vunpack.c.l.b16 %v90
    %v242 = vunpack.c.l.b16 %v91
    %v243 = vunpack.c.l.b16 %v92
    %v244 = vunpack.c.l.b16 %v93
    %v245 = vunpack.c.l.b16 %v94
    %v246 = vunpack.c.l.b16 %v95
    %v247 = vunpack.c.l.b16 %v96
    %v248 = vunpack.c.l.b16 %v97
    %v249 = vunpack.c.l.b16 %v98
    %v250 = vunpack.c.l.b16 %v99
    %v251 = vunpack.c.l.b16 %v100
    %v252 = vunpack.c.l.b16 %v101
    %v253 = vunpack.c.l.b16 %v102
    %v254 = vunpack.c.l.b16 %v103
    %v255 = vunpack.c.l.b16 %v104
    %v256 = vunpack.c.l.b16 %v105
    %v257 = vunpack.c.l.b16 %v106
    %v258 = vunpack.c.l.b16 %v107
    %v259 = vunpack.c.l.b16 %v108
    %v260 = vunpack.c.l.b16 %v109
    %v261 = vunpack.c.l.b16 %v110
    %v262 = vunpack.c.l.b16 %v111
    %v263 = vunpack.c.l.b16 %v112
    %v264 = vunpack.c.l.b16 %v113
    %v265 = vunpack.c.l.b16 %v114
    %v266 = vunpack.c.l.b16 %v115
    %v267 = vunpack.c.l.b16 %v116
    %v268 = vunpack.c.l.b16 %v117
    %v269 = vunpack.c.l.b16 %v118
    %v270 = vunpack.c.l.b16 %v119
    %v271 = vunpack.c.l.b16 %v120
    %v272 = vunpack.c.l.b16 %v121
    %v273 = vunpack.c.l.b16 %v122
    %v274 = vunpack.c.l.b16 %v123
    %v275 = vpack.c.b16 %v204, %v203
    %v276 = vpack.c.b16 %v206, %v205
    %v277 = vpack.c.b16 %v208, %v207
    %v278 = vpack.c.b16 %v210, %v209
    %v279 = vpack.c.b16 %v212, %v211
    %v280 = vpack.c.b16 %v214, %v213
    %v281 = vpack.c.b16 %v216, %v215
    %v282 = vpack.c.b16 %v218, %v217
    %v283 = vpack.c.b16 %v220, %v219
    %v284 = vpack.c.b16 %v222, %v221
    %v285 = vpack.c.b16 %v224, %v223
    %v286 = vpack.c.b16 %v226, %v225
    %v287 = vpack.c.b16 %v228, %v227
    %v288 = vpack.c.b16 %v230, %v229
    %v289 = vpack.c.b16 %v232, %v231
    %v290 = vpack.c.b16 %v234, %v233
    %v291 = vpack.c.b16 %v236, %v235
    %v292 = vpack.c.b16 %v238, %v237
    %v293 = vpack.c.b16 %v240, %v239
    %v294 = vpack.c.b16 %v242, %v241
    %v295 = vpack.c.b16 %v244, %v243
    %v296 = vpack.c.b16 %v246, %v245
    %v297 = vpack.c.b16 %v248, %v247
    %v298 = vpack.c.b16 %v250, %v249
    %v299 = vpack.c.b16 %v252, %v251
    %v300 = vpack.c.b16 %v254, %v253
    %v301 = vpack.c.b16 %v256, %v255
    %v302 = vpack.c.b16 %v258, %v257
    %v303 = vpack.c.b16 %v260, %v259
    %v304 = vpack.c.b16 %v262, %v261
    %v305 = vpack.c.b16 %v264, %v263
    %v306 = vpack.c.b16 %v266, %v265
    %v307 = vpack.c.b16 %v268, %v267
    %v308 = vpack.c.b16 %v270, %v269
    %v309 = vpack.c.b16 %v272, %v271
    %v310 = vpack.c.b16 %v274, %v273
    %vm347 = vcmask 523264
    %v349 = vsel %vm347, %v46, 0
    %v352 = vsel %vm347, %v51, 0
    %354 = vmatprep.subr.bf16.mxu0 0
    %355 = vmatpush1.bf16.msra.mxu0 %v275
    %356 = vmatprep.subr.bf16.mxu0 0
    %357 = vmatpush1.bf16.msra.mxu0 %v276
    %358 = vmatprep.subr.bf16.mxu0 0
    %359 = vmatpush1.bf16.msra.mxu0 %v277
    %360 = vmatprep.subr.bf16.mxu0 0
    %361 = vmatpush1.bf16.msra.mxu0 %v278
    %362 = vmatprep.subr.bf16.mxu0 0
    %363 = vmatpush1.bf16.msra.mxu0 %v279
    %364 = vmatprep.subr.bf16.mxu0 0
    %365 = vmatpush1.bf16.msra.mxu0 %v280
    %366 = vmatprep.subr.bf16.mxu0 0
    %367 = vmatpush1.bf16.msra.mxu0 %v281
    %368 = vmatprep.subr.bf16.mxu0 0
    %369 = vmatpush1.bf16.msra.mxu0 %v282
    %370 = vmatprep.subr.bf16.mxu0 0
    %371 = vmatpush1.bf16.msra.mxu0 %v283
    %372 = vmatprep.subr.bf16.mxu0 0
    %373 = vmatpush1.bf16.msra.mxu0 %v284
    %374 = vmatprep.subr.bf16.mxu0 0
    %375 = vmatpush1.bf16.msra.mxu0 %v285
    %376 = vmatprep.subr.bf16.mxu0 0
    %377 = vmatpush1.bf16.msra.mxu0 %v286
    %378 = vmatprep.subr.bf16.mxu0 0
    %379 = vmatpush1.bf16.msra.mxu0 %v287
    %380 = vmatprep.subr.bf16.mxu0 0
    %381 = vmatpush1.bf16.msra.mxu0 %v288
    %382 = vmatprep.subr.bf16.mxu0 0
    %383 = vmatpush1.bf16.msra.mxu0 %v289
    %384 = vmatprep.subr.bf16.mxu0 0
    %385 = vmatpush1.bf16.msra.mxu0 %v290
    %386 = vmatprep.mubr.bf16.mxu0 %v43
    %387 = vmatmul.mubr.bf16.gmra.mrb[0].mxu0 %v42
    %v388 = vpop.f32.mrb[0].mxu0
    %v389 = vadd.f32 %v129, %v388
    %v390 = vpop.f32.mrb[0].mxu0
    %v391 = vpop.f32.mrb[0].mxu0
    %v392 = vadd.f32 %v129, %v391
    %v393 = vpop.f32.mrb[0].mxu0
    %394 = vmatprep.mubr.bf16.mxu0 %v48
    %395 = vmatmul.mubr.bf16.gmra.mrb[0].mxu0 %v47
    %v396 = vpop.f32.mrb[0].mxu0
    %v397 = vadd.f32 %v129, %v396
    %v398 = vpop.f32.mrb[0].mxu0
    %v399 = vpop.f32.mrb[0].mxu0
    %v400 = vadd.f32 %v129, %v399
    %v401 = vpop.f32.mrb[0].mxu0
    %402 = vdwg.mxu0
    %403 = vmatprep.subr.bf16.mxu0 0
    %404 = vmatpush1.bf16.msra.mxu0 %v291
    %405 = vmatprep.subr.bf16.mxu0 0
    %406 = vmatpush1.bf16.msra.mxu0 %v292
    %407 = vmatprep.subr.bf16.mxu0 0
    %408 = vmatpush1.bf16.msra.mxu0 %v293
    %409 = vmatprep.subr.bf16.mxu0 0
    %410 = vmatpush1.bf16.msra.mxu0 %v294
    %411 = vmatprep.subr.bf16.mxu0 0
    %412 = vmatpush1.bf16.msra.mxu0 %v295
    %413 = vmatprep.subr.bf16.mxu0 0
    %414 = vmatpush1.bf16.msra.mxu0 %v296
    %415 = vmatprep.subr.bf16.mxu0 0
    %416 = vmatpush1.bf16.msra.mxu0 %v297
    %417 = vmatprep.subr.bf16.mxu0 0
    %418 = vmatpush1.bf16.msra.mxu0 %v298
    %419 = vmatprep.subr.bf16.mxu0 0
    %420 = vmatpush1.bf16.msra.mxu0 %v299
    %421 = vmatprep.subr.bf16.mxu0 0
    %422 = vmatpush1.bf16.msra.mxu0 %v300
    %423 = vmatprep.subr.bf16.mxu0 0
    %424 = vmatpush1.bf16.msra.mxu0 %v301
    %425 = vmatprep.subr.bf16.mxu0 0
    %426 = vmatpush1.bf16.msra.mxu0 %v302
    %427 = vmatprep.subr.bf16.mxu0 0
    %428 = vmatpush1.bf16.msra.mxu0 %v303
    %429 = vmatprep.subr.bf16.mxu0 0
    %430 = vmatpush1.bf16.msra.mxu0 %v304
    %431 = vmatprep.subr.bf16.mxu0 0
    %432 = vmatpush1.bf16.msra.mxu0 %v305
    %433 = vmatprep.subr.bf16.mxu0 0
    %434 = vmatpush1.bf16.msra.mxu0 %v306
    %435 = vmatprep.mubr.bf16.mxu0 %v45
    %436 = vmatmul.mubr.bf16.gmra.mrb[0].mxu0 %v44
    %v437 = vpop.f32.mrb[0].mxu0
    %v438 = vadd.f32 %v389, %v437
    %v439 = vpop.f32.mrb[0].mxu0
    %v440 = vpop.f32.mrb[0].mxu0
    %v441 = vadd.f32 %v392, %v440
    %v442 = vpop.f32.mrb[0].mxu0
    %443 = vmatprep.mubr.bf16.mxu0 %v50
    %444 = vmatmul.mubr.bf16.gmra.mrb[0].mxu0 %v49
    %v445 = vpop.f32.mrb[0].mxu0
    %v446 = vadd.f32 %v397, %v445
    %v447 = vpop.f32.mrb[0].mxu0
    %v448 = vpop.f32.mrb[0].mxu0
    %v449 = vadd.f32 %v400, %v448
    %v450 = vpop.f32.mrb[0].mxu0
    %451 = vdwg.mxu0
    %452 = vmatprep.subr.bf16.mxu0 0
    %453 = vmatpush1.bf16.msra.mxu0 %v307
    %454 = vmatprep.subr.bf16.mxu0 0
    %455 = vmatpush1.bf16.msra.mxu0 %v308
    %456 = vmatprep.subr.bf16.mxu0 0
    %457 = vmatpush1.bf16.msra.mxu0 %v309
    %458 = vmatprep.subr.bf16.mxu0 0
    %459 = vmatpush1.bf16.msra.mxu0 %v310
    %460 = vmatprep.subr.bf16.mxu0 0
    %461 = vmatpush1.bf16.msra.mxu0 0
    %462 = vmatprep.subr.bf16.mxu0 0
    %463 = vmatpush1.bf16.msra.mxu0 0
    %464 = vmatprep.subr.bf16.mxu0 0
    %465 = vmatpush1.bf16.msra.mxu0 0
    %466 = vmatprep.subr.bf16.mxu0 0
    %467 = vmatpush1.bf16.msra.mxu0 0
    %468 = vmatprep.subr.bf16.mxu0 0
    %469 = vmatpush1.bf16.msra.mxu0 0
    %470 = vmatprep.subr.bf16.mxu0 0
    %471 = vmatpush1.bf16.msra.mxu0 0
    %472 = vmatprep.subr.bf16.mxu0 0
    %473 = vmatpush1.bf16.msra.mxu0 0
    %474 = vmatprep.subr.bf16.mxu0 0
    %475 = vmatpush1.bf16.msra.mxu0 0
    %476 = vmatprep.subr.bf16.mxu0 0
    %477 = vmatpush1.bf16.msra.mxu0 0
    %478 = vmatprep.subr.bf16.mxu0 0
    %479 = vmatpush1.bf16.msra.mxu0 0
    %480 = vmatprep.subr.bf16.mxu0 0
    %481 = vmatpush1.bf16.msra.mxu0 0
    %482 = vmatprep.subr.bf16.mxu0 0
    %483 = vmatpush1.bf16.msra.mxu0 0
    %484 = vmatprep.mubr.bf16.mxu0 0
    %485 = vmatmul.mubr.bf16.gmra.mrb[0].mxu0 %v349
    %v486 = vpop.f32.mrb[0].mxu0
    %v487 = vadd.f32 %v438, %v486
    %v488 = vpop.f32.mrb[0].mxu0
    %v489 = vpop.f32.mrb[0].mxu0
    %v490 = vadd.f32 %v441, %v489
    %v491 = vpop.f32.mrb[0].mxu0
    %492 = vmatprep.mubr.bf16.mxu0 0
    %493 = vmatmul.mubr.bf16.gmra.mrb[0].mxu0 %v352
    %v494 = vpop.f32.mrb[0].mxu0
    %v495 = vadd.f32 %v446, %v494
    %v496 = vpop.f32.mrb[0].mxu0
    %v497 = vpop.f32.mrb[0].mxu0
    %v498 = vadd.f32 %v449, %v497
    %v499 = vpop.f32.mrb[0].mxu0
    %500 = vdwg.mxu0
    %v501 = vmul.f32 %v487, 0.999995
    %v502 = vmul.f32 %v490, 0.999995
    %v503 = vmul.f32 %v495, 0.999995
    %v504 = vmul.f32 %v498, 0.999995
    %v505 = vmax.f32 %v501, 0.0
    %v506 = vmax.f32 %v502, 0.0
    %v507 = vmax.f32 %v503, 0.0
    %v508 = vmax.f32 %v504, 0.0
    %v509 = vld [vmem:[%s3] sm:$0xff]
    %v510 = vld [vmem:[%s3 + $0x8] sm:$0xff]
    %v511 = vld [vmem:[%s3 + $0x10] sm:$0xff]
    %v512 = vld [vmem:[%s3 + $0x18] sm:$0xff]
    %v513 = vadd.f32 %v505, %v509
    %v514 = vadd.f32 %v506, %v510
    %v515 = vadd.f32 %v507, %v511
    %v516 = vadd.f32 %v508, %v512
    %v517 = vpack.c.bf16 %v514, %v513
    %v518 = vpack.c.bf16 %v516, %v515
    %v519 = vld [vmem:[%s4] sm:$0xff]
    %v520 = vld [vmem:[%s4 + $0x8] sm:$0xff]
    %v521 = vld [vmem:[%s4 + $0x10] sm:$0xff]
    %v522 = vld [vmem:[%s4 + $0x18] sm:$0xff]
    %v523 = vld [vmem:[%s4 + $0x20] sm:$0xff]
    %v524 = vld [vmem:[%s4 + $0x28] sm:$0xff]
    %v525 = vld [vmem:[%s4 + $0x30] sm:$0xff]
    %v526 = vld [vmem:[%s4 + $0x38] sm:$0xff]
    %v535 = vunpack.c.l.b16 %v519
    %v536 = vunpack.c.h.b16 %v519
    %v537 = vunpack.c.l.b16 %v520
    %v538 = vunpack.c.h.b16 %v520
    %v539 = vunpack.c.l.b16 %v521
    %v540 = vunpack.c.h.b16 %v521
    %v541 = vunpack.c.l.b16 %v522
    %v542 = vunpack.c.h.b16 %v522
    %v543 = vunpack.c.l.b16 %v523
    %v544 = vunpack.c.h.b16 %v523
    %v545 = vunpack.c.l.b16 %v524
    %v546 = vunpack.c.h.b16 %v524
    %v547 = vunpack.c.l.b16 %v525
    %v548 = vunpack.c.h.b16 %v525
    %v549 = vunpack.c.l.b16 %v526
    %v550 = vunpack.c.h.b16 %v526
    %v551 = vpack.c.b16 %v537, %v535
    %v552 = vpack.c.b16 %v538, %v536
    %v553 = vpack.c.b16 %v541, %v539
    %v554 = vpack.c.b16 %v542, %v540
    %v555 = vpack.c.b16 %v545, %v543
    %v556 = vpack.c.b16 %v546, %v544
    %v557 = vpack.c.b16 %v549, %v547
    %v558 = vpack.c.b16 %v550, %v548
    %v568 = vsel %vm347, %v517, 0
    %v571 = vsel %vm347, %v518, 0
    %573 = vmatprep.subr.bf16.mxu0 %v552
    %574 = vmatpush1.bf16.msra.mxu0 %v551
    %575 = vmatprep.subr.bf16.mxu0 %v554
    %576 = vmatpush1.bf16.msra.mxu0 %v553
    %577 = vmatprep.subr.bf16.mxu0 %v556
    %578 = vmatpush1.bf16.msra.mxu0 %v555
    %579 = vmatprep.subr.bf16.mxu0 %v558
    %580 = vmatpush1.bf16.msra.mxu0 %v557
    %581 = vmatprep.subr.bf16.mxu0 0
    %582 = vmatpush1.bf16.msra.mxu0 0
    %583 = vmatprep.subr.bf16.mxu0 0
    %584 = vmatpush1.bf16.msra.mxu0 0
    %585 = vmatprep.subr.bf16.mxu0 0
    %586 = vmatpush1.bf16.msra.mxu0 0
    %587 = vmatprep.subr.bf16.mxu0 0
    %588 = vmatpush1.bf16.msra.mxu0 0
    %589 = vmatprep.subr.bf16.mxu0 0
    %590 = vmatpush1.bf16.msra.mxu0 0
    %591 = vmatprep.subr.bf16.mxu0 0
    %592 = vmatpush1.bf16.msra.mxu0 0
    %593 = vmatprep.subr.bf16.mxu0 0
    %594 = vmatpush1.bf16.msra.mxu0 0
    %595 = vmatprep.subr.bf16.mxu0 0
    %596 = vmatpush1.bf16.msra.mxu0 0
    %597 = vmatprep.subr.bf16.mxu0 0
    %598 = vmatpush1.bf16.msra.mxu0 0
    %599 = vmatprep.subr.bf16.mxu0 0
    %600 = vmatpush1.bf16.msra.mxu0 0
    %601 = vmatprep.subr.bf16.mxu0 0
    %602 = vmatpush1.bf16.msra.mxu0 0
    %603 = vmatprep.subr.bf16.mxu0 0
    %604 = vmatpush1.bf16.msra.mxu0 0
    %605 = vmatprep.mubr.bf16.mxu0 0
    %606 = vmatmul.mubr.bf16.gmra.mrb[0].mxu0 %v568
    %v607 = vpop.f32.mrb[0].mxu0
    %v608 = vadd.f32 0.0, %v607
    %v609 = vpop.f32.mrb[0].mxu0
    %v610 = vadd.f32 0.0, %v609
    %v611 = vpop.f32.mrb[0].mxu0
    %v612 = vadd.f32 0.0, %v611
    %v613 = vpop.f32.mrb[0].mxu0
    %v614 = vadd.f32 0.0, %v613
    %615 = vmatprep.mubr.bf16.mxu0 0
    %616 = vmatmul.mubr.bf16.gmra.mrb[0].mxu0 %v571
    %v617 = vpop.f32.mrb[0].mxu0
    %v618 = vadd.f32 0.0, %v617
    %v619 = vpop.f32.mrb[0].mxu0
    %v620 = vadd.f32 0.0, %v619
    %v621 = vpop.f32.mrb[0].mxu0
    %v622 = vadd.f32 0.0, %v621
    %v623 = vpop.f32.mrb[0].mxu0
    %v624 = vadd.f32 0.0, %v623
    %625 = vdwg.mxu0
    %626 = vst [vmem:[#allocation2] sm:$0xff] %v608
    %627 = vst [vmem:[#allocation2 + $0x8] sm:$0xff] %v610
    %628 = vst [vmem:[#allocation2 + $0x10] sm:$0xff] %v612
    %629 = vst [vmem:[#allocation2 + $0x18] sm:$0xff] %v614
    %630 = vst [vmem:[#allocation2 + $0x20] sm:$0xff] %v618
    %631 = vst [vmem:[#allocation2 + $0x28] sm:$0xff] %v620
    %632 = vst [vmem:[#allocation2 + $0x30] sm:$0xff] %v622
    %633 = vst [vmem:[#allocation2 + $0x38] sm:$0xff] %v624
    // Predicated region
    $region22: #{tpu_custom_call.1} parent=1 // pred_check
      _
    $region23: #{tpu_custom_call.1} parent=1 // pred_check_branch
      %635 = sbr.rel (0) target = $region25
    $region24: #{tpu_custom_call.1} parent=1 // pred_region
      %s637 = ssub.s32 1024, 1024
      %638 = vsyncadd [#allocation3], %s637
      %s639 = sshll.u32 [#allocation2], 4
      %s640 = int_to_ptr.vmem [resolvable:$true] %s639
      %645 = dma.vmem_to_hbm [thread:$0]  %s640, 1024, %s5, [#allocation3], 256, 256, 16
    $region25: #{tpu_custom_call.1} parent=1 // pred_fallthru
      _
    // Predicated region
    $region26: #{tpu_custom_call.1} parent=1 // pred_check
      _
    $region27: #{tpu_custom_call.1} parent=1 // pred_check_branch
      %647 = sbr.rel (0) target = $region29
    $region28: #{tpu_custom_call.1} parent=1 // pred_region
      %648 = dma.done [#allocation3], 1024
    $region29: #{tpu_custom_call.1} parent=1 // pred_fallthru
      _
    %649 = vsyncpa [#allocation3], 1

</llo_original>
